<compile_context>
chip_gen: v7x
topology: tpu7x:2x2x1
jax: 0.10.0
libtpu: 0.0.40
codegen_flags: <defaults>
</compile_context>

<pallas_src>
import jax
import jax.numpy as jnp
from jax.experimental import pallas as pl
from jax.experimental.pallas import tpu as pltpu

LAYER_DIMS = [(8, 6), (6, 4), (4, 2), (2, 1)]            # (fan_in, fan_out)
IN_F = LAYER_DIMS[0][0]                                   # 8 input features
N_PARAMS = sum(fo * (fi + 1) for fi, fo in LAYER_DIMS)    # 95 scalars
LANES = 128


def mlp_kernel(p_ref, x_ref, o_ref):
    # p_ref: (95,) f32 in SMEM  (per neuron: fin weights then bias)
    # x_ref: (IN_F, TR, 128) f32 batch tile, batch index = row*128 + lane
    # o_ref: (TR, 128) f32 dense output tile
    h = [x_ref[k] for k in range(IN_F)]        # IN_F dense (TR, 128) channels
    off = 0
    for fin, fout in LAYER_DIMS:
        nxt = []
        for j in range(fout):
            base = off + j * (fin + 1)
            acc = h[0] * p_ref[base]                       # scalar * vector (VPU)
            for k in range(1, fin):
                acc = acc + h[k] * p_ref[base + k]
            acc = acc + p_ref[base + fin]                  # + bias (scalar)
            e = jnp.exp(-acc)                              # EUP
            nxt.append(pl.reciprocal(1.0 + e, approx=False))
        h = nxt
        off += fout * (fin + 1)
    o_ref[...] = h[0].astype(o_ref.dtype)


def pack_params(params):
    """Pack [(w (fin,fout), b (1,fout)), ...] into one flat (95,) f32 buffer.

    Per output neuron j of each layer: fin weights (w[:, j]) followed by its
    bias, segments concatenated layer after layer.
    """
    segs = []
    for w, b in params:
        fin, fout = w.shape
        blk = jnp.concatenate([w.T, b.reshape(fout, 1)], axis=1)  # (fout, fin+1)
        segs.append(blk.reshape(-1))
    return jnp.concatenate(segs).astype(jnp.float32)


def mlp_forward(x, packed_params, tile_elems=32768):
    n = x.shape[0]
    rows_needed = max(1, pl.cdiv(n, LANES))
    # Tile rows (each row = 128 lane elements). Large tiles amortize the
    # ~0.35us per-grid-step overhead; shrink (keeping multiples of 8 rows)
    # for small n so padding stays bounded and the grid keeps >=2 steps
    # whenever there is enough data.
    tr = max(8, tile_elems // LANES)
    while tr > 8 and rows_needed <= tr:
        tr //= 2
    r_pad = pl.cdiv(rows_needed, tr) * tr
    n_pad = r_pad * LANES

    # Lane/sublane-dense layout: (features, rows, 128), batch idx = row*128+lane.
    # TODO(synk): accept x already in (features, batch) layout from the producer
    # to avoid this extra transpose/pad HBM pass before the kernel.
    xt = jnp.zeros((IN_F, n_pad), jnp.float32).at[:, :n].set(
        x.T.astype(jnp.float32)).reshape(IN_F, r_pad, LANES)

    flops = 2 * n_pad * sum(fi * fo for fi, fo in LAYER_DIMS)
    transcendentals = n_pad * sum(fo for _, fo in LAYER_DIMS)
    bytes_accessed = n_pad * (IN_F + 1) * 4 + N_PARAMS * 4

    out = pl.pallas_call(
        mlp_kernel,
        out_shape=jax.ShapeDtypeStruct((r_pad, LANES), jnp.float32),
        grid_spec=pltpu.PrefetchScalarGridSpec(
            num_scalar_prefetch=0,
            grid=(r_pad // tr,),
            in_specs=[
                # whole packed-param vector resident in SMEM (scalar reads)
                pl.BlockSpec(memory_space=pltpu.MemorySpace.SMEM),
                # batch tile of activations, dense (IN_F, TR, 128)
                pl.BlockSpec((IN_F, tr, LANES), lambda i: (0, i, 0)),
            ],
            out_specs=pl.BlockSpec((tr, LANES), lambda i: (i, 0)),
        ),
        compiler_params=pltpu.CompilerParams(
            dimension_semantics=("parallel",)),        # both TCs on v7x
        cost_estimate=pl.CostEstimate(
            flops=flops,
            transcendentals=transcendentals,
            bytes_accessed=bytes_accessed),
    )(packed_params, xt)
    return out.reshape(-1)[:n].reshape(n, 1)


def init_params(key):
    """Deterministic init mimicking torch.nn.Linear default U[-1/sqrt(fan_in), +1/sqrt(fan_in)]."""
    params = []
    for fan_in, fan_out in LAYER_DIMS:
        key, kw, kb = jax.random.split(key, 3)
        bound = 1.0 / (fan_in ** 0.5)
        w = jax.random.uniform(kw, (fan_in, fan_out), jnp.float32, -bound, bound)
        b = jax.random.uniform(kb, (1, fan_out), jnp.float32, -bound, bound)
        params.append((w, b))
    return params


def reference_forward(x, params):
    h = x
    for w, b in params:
        h = jax.nn.sigmoid(h @ w + b)
    return h


if __name__ == "__main__":
    key = jax.random.PRNGKey(0)
    key, kx1, kx2 = jax.random.split(key, 3)
    params = init_params(key)
    packed = pack_params(params)

    # Small batch (single grid step, heavy padding path).
    batch = 8
    x = jax.random.normal(kx1, (batch, IN_F), jnp.float32)
    out = jax.block_until_ready(mlp_forward(x, packed))
    ref = reference_forward(x, params)
    assert out.shape == (batch, 1), out.shape
    assert jnp.allclose(out, ref, atol=1e-5, rtol=1e-5), "mismatch vs JAX reference (small batch)"

    # Larger batch (multi-step grid + partial last tile).
    batch2 = 2500
    x2 = jax.random.normal(kx2, (batch2, IN_F), jnp.float32)
    out2 = jax.block_until_ready(mlp_forward(x2, packed))
    ref2 = reference_forward(x2, params)
    assert out2.shape == (batch2, 1), out2.shape
    assert jnp.allclose(out2, ref2, atol=1e-5, rtol=1e-5), "mismatch vs JAX reference (large batch)"

    print("KERNEL_OK")
</pallas_src>

<mosaic_0001>
module attributes {stable_mosaic.version = 11 : i64} {
  func.func @mlp_kernel(%arg0: i32, %arg1: memref<95xf32, #tpu.memory_space<smem>>, %arg2: memref<8x8x128xf32, #tpu.memory_space<vmem>>, %arg3: memref<8x128xf32, #tpu.memory_space<vmem>>) attributes {dimension_semantics = [#tpu.dimension_semantics<parallel>], iteration_bounds = array<i64: 1>, scalar_prefetch = 0 : i64, scratch_operands = 0 : i64, tpu.core_type = #tpu.core_type<tc>, window_params = [{transform_indices = @transform_0, window_bounds = array<i64: 95>}, {transform_indices = @transform_1, window_bounds = array<i64: 8, 8, 128>}, {transform_indices = @transform_2, window_bounds = array<i64: 8, 128>}]} {
    %c0 = arith.constant 0 : index
    %c0_0 = arith.constant 0 : index
    %c0_1 = arith.constant 0 : index
    %0 = vector.load %arg2[%c0, %c0_0, %c0_1] : memref<8x8x128xf32, #tpu.memory_space<vmem>>, vector<1x8x128xf32>
    %1 = vector.shape_cast %0 : vector<1x8x128xf32> to vector<8x128xf32>
    %c1 = arith.constant 1 : index
    %c0_2 = arith.constant 0 : index
    %c0_3 = arith.constant 0 : index
    %2 = vector.load %arg2[%c1, %c0_2, %c0_3] : memref<8x8x128xf32, #tpu.memory_space<vmem>>, vector<1x8x128xf32>
    %3 = vector.shape_cast %2 : vector<1x8x128xf32> to vector<8x128xf32>
    %c2 = arith.constant 2 : index
    %c0_4 = arith.constant 0 : index
    %c0_5 = arith.constant 0 : index
    %4 = vector.load %arg2[%c2, %c0_4, %c0_5] : memref<8x8x128xf32, #tpu.memory_space<vmem>>, vector<1x8x128xf32>
    %5 = vector.shape_cast %4 : vector<1x8x128xf32> to vector<8x128xf32>
    %c3 = arith.constant 3 : index
    %c0_6 = arith.constant 0 : index
    %c0_7 = arith.constant 0 : index
    %6 = vector.load %arg2[%c3, %c0_6, %c0_7] : memref<8x8x128xf32, #tpu.memory_space<vmem>>, vector<1x8x128xf32>
    %7 = vector.shape_cast %6 : vector<1x8x128xf32> to vector<8x128xf32>
    %c4 = arith.constant 4 : index
    %c0_8 = arith.constant 0 : index
    %c0_9 = arith.constant 0 : index
    %8 = vector.load %arg2[%c4, %c0_8, %c0_9] : memref<8x8x128xf32, #tpu.memory_space<vmem>>, vector<1x8x128xf32>
    %9 = vector.shape_cast %8 : vector<1x8x128xf32> to vector<8x128xf32>
    %c5 = arith.constant 5 : index
    %c0_10 = arith.constant 0 : index
    %c0_11 = arith.constant 0 : index
    %10 = vector.load %arg2[%c5, %c0_10, %c0_11] : memref<8x8x128xf32, #tpu.memory_space<vmem>>, vector<1x8x128xf32>
    %11 = vector.shape_cast %10 : vector<1x8x128xf32> to vector<8x128xf32>
    %c6 = arith.constant 6 : index
    %c0_12 = arith.constant 0 : index
    %c0_13 = arith.constant 0 : index
    %12 = vector.load %arg2[%c6, %c0_12, %c0_13] : memref<8x8x128xf32, #tpu.memory_space<vmem>>, vector<1x8x128xf32>
    %13 = vector.shape_cast %12 : vector<1x8x128xf32> to vector<8x128xf32>
    %c7 = arith.constant 7 : index
    %c0_14 = arith.constant 0 : index
    %c0_15 = arith.constant 0 : index
    %14 = vector.load %arg2[%c7, %c0_14, %c0_15] : memref<8x8x128xf32, #tpu.memory_space<vmem>>, vector<1x8x128xf32>
    %15 = vector.shape_cast %14 : vector<1x8x128xf32> to vector<8x128xf32>
    %c0_16 = arith.constant 0 : index
    %16 = memref.load %arg1[%c0_16] : memref<95xf32, #tpu.memory_space<smem>>
    %17 = vector.broadcast %16 : f32 to vector<8x128xf32>
    %18 = arith.mulf %1, %17 : vector<8x128xf32>
    %c1_17 = arith.constant 1 : index
    %19 = memref.load %arg1[%c1_17] : memref<95xf32, #tpu.memory_space<smem>>
    %20 = vector.broadcast %19 : f32 to vector<8x128xf32>
    %21 = arith.mulf %3, %20 : vector<8x128xf32>
    %22 = arith.addf %18, %21 : vector<8x128xf32>
    %c2_18 = arith.constant 2 : index
    %23 = memref.load %arg1[%c2_18] : memref<95xf32, #tpu.memory_space<smem>>
    %24 = vector.broadcast %23 : f32 to vector<8x128xf32>
    %25 = arith.mulf %5, %24 : vector<8x128xf32>
    %26 = arith.addf %22, %25 : vector<8x128xf32>
    %c3_19 = arith.constant 3 : index
    %27 = memref.load %arg1[%c3_19] : memref<95xf32, #tpu.memory_space<smem>>
    %28 = vector.broadcast %27 : f32 to vector<8x128xf32>
    %29 = arith.mulf %7, %28 : vector<8x128xf32>
    %30 = arith.addf %26, %29 : vector<8x128xf32>
    %c4_20 = arith.constant 4 : index
    %31 = memref.load %arg1[%c4_20] : memref<95xf32, #tpu.memory_space<smem>>
    %32 = vector.broadcast %31 : f32 to vector<8x128xf32>
    %33 = arith.mulf %9, %32 : vector<8x128xf32>
    %34 = arith.addf %30, %33 : vector<8x128xf32>
    %c5_21 = arith.constant 5 : index
    %35 = memref.load %arg1[%c5_21] : memref<95xf32, #tpu.memory_space<smem>>
    %36 = vector.broadcast %35 : f32 to vector<8x128xf32>
    %37 = arith.mulf %11, %36 : vector<8x128xf32>
    %38 = arith.addf %34, %37 : vector<8x128xf32>
    %c6_22 = arith.constant 6 : index
    %39 = memref.load %arg1[%c6_22] : memref<95xf32, #tpu.memory_space<smem>>
    %40 = vector.broadcast %39 : f32 to vector<8x128xf32>
    %41 = arith.mulf %13, %40 : vector<8x128xf32>
    %42 = arith.addf %38, %41 : vector<8x128xf32>
    %c7_23 = arith.constant 7 : index
    %43 = memref.load %arg1[%c7_23] : memref<95xf32, #tpu.memory_space<smem>>
    %44 = vector.broadcast %43 : f32 to vector<8x128xf32>
    %45 = arith.mulf %15, %44 : vector<8x128xf32>
    %46 = arith.addf %42, %45 : vector<8x128xf32>
    %c8 = arith.constant 8 : index
    %47 = memref.load %arg1[%c8] : memref<95xf32, #tpu.memory_space<smem>>
    %48 = vector.broadcast %47 : f32 to vector<8x128xf32>
    %49 = arith.addf %46, %48 : vector<8x128xf32>
    %cst = arith.constant 0.000000e+00 : f32
    %50 = vector.broadcast %cst : f32 to vector<8x128xf32>
    %51 = arith.subf %50, %49 : vector<8x128xf32>
    %52 = math.exp %51 : vector<8x128xf32>
    %cst_24 = arith.constant 1.000000e+00 : f32
    %53 = vector.broadcast %cst_24 : f32 to vector<8x128xf32>
    %54 = arith.addf %53, %52 : vector<8x128xf32>
    %55 = tpu.reciprocal %54 : vector<8x128xf32> -> vector<8x128xf32>
    %c9 = arith.constant 9 : index
    %56 = memref.load %arg1[%c9] : memref<95xf32, #tpu.memory_space<smem>>
    %57 = vector.broadcast %56 : f32 to vector<8x128xf32>
    %58 = arith.mulf %1, %57 : vector<8x128xf32>
    %c10 = arith.constant 10 : index
    %59 = memref.load %arg1[%c10] : memref<95xf32, #tpu.memory_space<smem>>
    %60 = vector.broadcast %59 : f32 to vector<8x128xf32>
    %61 = arith.mulf %3, %60 : vector<8x128xf32>
    %62 = arith.addf %58, %61 : vector<8x128xf32>
    %c11 = arith.constant 11 : index
    %63 = memref.load %arg1[%c11] : memref<95xf32, #tpu.memory_space<smem>>
    %64 = vector.broadcast %63 : f32 to vector<8x128xf32>
    %65 = arith.mulf %5, %64 : vector<8x128xf32>
    %66 = arith.addf %62, %65 : vector<8x128xf32>
    %c12 = arith.constant 12 : index
    %67 = memref.load %arg1[%c12] : memref<95xf32, #tpu.memory_space<smem>>
    %68 = vector.broadcast %67 : f32 to vector<8x128xf32>
    %69 = arith.mulf %7, %68 : vector<8x128xf32>
    %70 = arith.addf %66, %69 : vector<8x128xf32>
    %c13 = arith.constant 13 : index
    %71 = memref.load %arg1[%c13] : memref<95xf32, #tpu.memory_space<smem>>
    %72 = vector.broadcast %71 : f32 to vector<8x128xf32>
    %73 = arith.mulf %9, %72 : vector<8x128xf32>
    %74 = arith.addf %70, %73 : vector<8x128xf32>
    %c14 = arith.constant 14 : index
    %75 = memref.load %arg1[%c14] : memref<95xf32, #tpu.memory_space<smem>>
    %76 = vector.broadcast %75 : f32 to vector<8x128xf32>
    %77 = arith.mulf %11, %76 : vector<8x128xf32>
    %78 = arith.addf %74, %77 : vector<8x128xf32>
    %c15 = arith.constant 15 : index
    %79 = memref.load %arg1[%c15] : memref<95xf32, #tpu.memory_space<smem>>
    %80 = vector.broadcast %79 : f32 to vector<8x128xf32>
    %81 = arith.mulf %13, %80 : vector<8x128xf32>
    %82 = arith.addf %78, %81 : vector<8x128xf32>
    %c16 = arith.constant 16 : index
    %83 = memref.load %arg1[%c16] : memref<95xf32, #tpu.memory_space<smem>>
    %84 = vector.broadcast %83 : f32 to vector<8x128xf32>
    %85 = arith.mulf %15, %84 : vector<8x128xf32>
    %86 = arith.addf %82, %85 : vector<8x128xf32>
    %c17 = arith.constant 17 : index
    %87 = memref.load %arg1[%c17] : memref<95xf32, #tpu.memory_space<smem>>
    %88 = vector.broadcast %87 : f32 to vector<8x128xf32>
    %89 = arith.addf %86, %88 : vector<8x128xf32>
    %cst_25 = arith.constant 0.000000e+00 : f32
    %90 = vector.broadcast %cst_25 : f32 to vector<8x128xf32>
    %91 = arith.subf %90, %89 : vector<8x128xf32>
    %92 = math.exp %91 : vector<8x128xf32>
    %cst_26 = arith.constant 1.000000e+00 : f32
    %93 = vector.broadcast %cst_26 : f32 to vector<8x128xf32>
    %94 = arith.addf %93, %92 : vector<8x128xf32>
    %95 = tpu.reciprocal %94 : vector<8x128xf32> -> vector<8x128xf32>
    %c18 = arith.constant 18 : index
    %96 = memref.load %arg1[%c18] : memref<95xf32, #tpu.memory_space<smem>>
    %97 = vector.broadcast %96 : f32 to vector<8x128xf32>
    %98 = arith.mulf %1, %97 : vector<8x128xf32>
    %c19 = arith.constant 19 : index
    %99 = memref.load %arg1[%c19] : memref<95xf32, #tpu.memory_space<smem>>
    %100 = vector.broadcast %99 : f32 to vector<8x128xf32>
    %101 = arith.mulf %3, %100 : vector<8x128xf32>
    %102 = arith.addf %98, %101 : vector<8x128xf32>
    %c20 = arith.constant 20 : index
    %103 = memref.load %arg1[%c20] : memref<95xf32, #tpu.memory_space<smem>>
    %104 = vector.broadcast %103 : f32 to vector<8x128xf32>
    %105 = arith.mulf %5, %104 : vector<8x128xf32>
    %106 = arith.addf %102, %105 : vector<8x128xf32>
    %c21 = arith.constant 21 : index
    %107 = memref.load %arg1[%c21] : memref<95xf32, #tpu.memory_space<smem>>
    %108 = vector.broadcast %107 : f32 to vector<8x128xf32>
    %109 = arith.mulf %7, %108 : vector<8x128xf32>
    %110 = arith.addf %106, %109 : vector<8x128xf32>
    %c22 = arith.constant 22 : index
    %111 = memref.load %arg1[%c22] : memref<95xf32, #tpu.memory_space<smem>>
    %112 = vector.broadcast %111 : f32 to vector<8x128xf32>
    %113 = arith.mulf %9, %112 : vector<8x128xf32>
    %114 = arith.addf %110, %113 : vector<8x128xf32>
    %c23 = arith.constant 23 : index
    %115 = memref.load %arg1[%c23] : memref<95xf32, #tpu.memory_space<smem>>
    %116 = vector.broadcast %115 : f32 to vector<8x128xf32>
    %117 = arith.mulf %11, %116 : vector<8x128xf32>
    %118 = arith.addf %114, %117 : vector<8x128xf32>
    %c24 = arith.constant 24 : index
    %119 = memref.load %arg1[%c24] : memref<95xf32, #tpu.memory_space<smem>>
    %120 = vector.broadcast %119 : f32 to vector<8x128xf32>
    %121 = arith.mulf %13, %120 : vector<8x128xf32>
    %122 = arith.addf %118, %121 : vector<8x128xf32>
    %c25 = arith.constant 25 : index
    %123 = memref.load %arg1[%c25] : memref<95xf32, #tpu.memory_space<smem>>
    %124 = vector.broadcast %123 : f32 to vector<8x128xf32>
    %125 = arith.mulf %15, %124 : vector<8x128xf32>
    %126 = arith.addf %122, %125 : vector<8x128xf32>
    %c26 = arith.constant 26 : index
    %127 = memref.load %arg1[%c26] : memref<95xf32, #tpu.memory_space<smem>>
    %128 = vector.broadcast %127 : f32 to vector<8x128xf32>
    %129 = arith.addf %126, %128 : vector<8x128xf32>
    %cst_27 = arith.constant 0.000000e+00 : f32
    %130 = vector.broadcast %cst_27 : f32 to vector<8x128xf32>
    %131 = arith.subf %130, %129 : vector<8x128xf32>
    %132 = math.exp %131 : vector<8x128xf32>
    %cst_28 = arith.constant 1.000000e+00 : f32
    %133 = vector.broadcast %cst_28 : f32 to vector<8x128xf32>
    %134 = arith.addf %133, %132 : vector<8x128xf32>
    %135 = tpu.reciprocal %134 : vector<8x128xf32> -> vector<8x128xf32>
    %c27 = arith.constant 27 : index
    %136 = memref.load %arg1[%c27] : memref<95xf32, #tpu.memory_space<smem>>
    %137 = vector.broadcast %136 : f32 to vector<8x128xf32>
    %138 = arith.mulf %1, %137 : vector<8x128xf32>
    %c28 = arith.constant 28 : index
    %139 = memref.load %arg1[%c28] : memref<95xf32, #tpu.memory_space<smem>>
    %140 = vector.broadcast %139 : f32 to vector<8x128xf32>
    %141 = arith.mulf %3, %140 : vector<8x128xf32>
    %142 = arith.addf %138, %141 : vector<8x128xf32>
    %c29 = arith.constant 29 : index
    %143 = memref.load %arg1[%c29] : memref<95xf32, #tpu.memory_space<smem>>
    %144 = vector.broadcast %143 : f32 to vector<8x128xf32>
    %145 = arith.mulf %5, %144 : vector<8x128xf32>
    %146 = arith.addf %142, %145 : vector<8x128xf32>
    %c30 = arith.constant 30 : index
    %147 = memref.load %arg1[%c30] : memref<95xf32, #tpu.memory_space<smem>>
    %148 = vector.broadcast %147 : f32 to vector<8x128xf32>
    %149 = arith.mulf %7, %148 : vector<8x128xf32>
    %150 = arith.addf %146, %149 : vector<8x128xf32>
    %c31 = arith.constant 31 : index
    %151 = memref.load %arg1[%c31] : memref<95xf32, #tpu.memory_space<smem>>
    %152 = vector.broadcast %151 : f32 to vector<8x128xf32>
    %153 = arith.mulf %9, %152 : vector<8x128xf32>
    %154 = arith.addf %150, %153 : vector<8x128xf32>
    %c32 = arith.constant 32 : index
    %155 = memref.load %arg1[%c32] : memref<95xf32, #tpu.memory_space<smem>>
    %156 = vector.broadcast %155 : f32 to vector<8x128xf32>
    %157 = arith.mulf %11, %156 : vector<8x128xf32>
    %158 = arith.addf %154, %157 : vector<8x128xf32>
    %c33 = arith.constant 33 : index
    %159 = memref.load %arg1[%c33] : memref<95xf32, #tpu.memory_space<smem>>
    %160 = vector.broadcast %159 : f32 to vector<8x128xf32>
    %161 = arith.mulf %13, %160 : vector<8x128xf32>
    %162 = arith.addf %158, %161 : vector<8x128xf32>
    %c34 = arith.constant 34 : index
    %163 = memref.load %arg1[%c34] : memref<95xf32, #tpu.memory_space<smem>>
    %164 = vector.broadcast %163 : f32 to vector<8x128xf32>
    %165 = arith.mulf %15, %164 : vector<8x128xf32>
    %166 = arith.addf %162, %165 : vector<8x128xf32>
    %c35 = arith.constant 35 : index
    %167 = memref.load %arg1[%c35] : memref<95xf32, #tpu.memory_space<smem>>
    %168 = vector.broadcast %167 : f32 to vector<8x128xf32>
    %169 = arith.addf %166, %168 : vector<8x128xf32>
    %cst_29 = arith.constant 0.000000e+00 : f32
    %170 = vector.broadcast %cst_29 : f32 to vector<8x128xf32>
    %171 = arith.subf %170, %169 : vector<8x128xf32>
    %172 = math.exp %171 : vector<8x128xf32>
    %cst_30 = arith.constant 1.000000e+00 : f32
    %173 = vector.broadcast %cst_30 : f32 to vector<8x128xf32>
    %174 = arith.addf %173, %172 : vector<8x128xf32>
    %175 = tpu.reciprocal %174 : vector<8x128xf32> -> vector<8x128xf32>
    %c36 = arith.constant 36 : index
    %176 = memref.load %arg1[%c36] : memref<95xf32, #tpu.memory_space<smem>>
    %177 = vector.broadcast %176 : f32 to vector<8x128xf32>
    %178 = arith.mulf %1, %177 : vector<8x128xf32>
    %c37 = arith.constant 37 : index
    %179 = memref.load %arg1[%c37] : memref<95xf32, #tpu.memory_space<smem>>
    %180 = vector.broadcast %179 : f32 to vector<8x128xf32>
    %181 = arith.mulf %3, %180 : vector<8x128xf32>
    %182 = arith.addf %178, %181 : vector<8x128xf32>
    %c38 = arith.constant 38 : index
    %183 = memref.load %arg1[%c38] : memref<95xf32, #tpu.memory_space<smem>>
    %184 = vector.broadcast %183 : f32 to vector<8x128xf32>
    %185 = arith.mulf %5, %184 : vector<8x128xf32>
    %186 = arith.addf %182, %185 : vector<8x128xf32>
    %c39 = arith.constant 39 : index
    %187 = memref.load %arg1[%c39] : memref<95xf32, #tpu.memory_space<smem>>
    %188 = vector.broadcast %187 : f32 to vector<8x128xf32>
    %189 = arith.mulf %7, %188 : vector<8x128xf32>
    %190 = arith.addf %186, %189 : vector<8x128xf32>
    %c40 = arith.constant 40 : index
    %191 = memref.load %arg1[%c40] : memref<95xf32, #tpu.memory_space<smem>>
    %192 = vector.broadcast %191 : f32 to vector<8x128xf32>
    %193 = arith.mulf %9, %192 : vector<8x128xf32>
    %194 = arith.addf %190, %193 : vector<8x128xf32>
    %c41 = arith.constant 41 : index
    %195 = memref.load %arg1[%c41] : memref<95xf32, #tpu.memory_space<smem>>
    %196 = vector.broadcast %195 : f32 to vector<8x128xf32>
    %197 = arith.mulf %11, %196 : vector<8x128xf32>
    %198 = arith.addf %194, %197 : vector<8x128xf32>
    %c42 = arith.constant 42 : index
    %199 = memref.load %arg1[%c42] : memref<95xf32, #tpu.memory_space<smem>>
    %200 = vector.broadcast %199 : f32 to vector<8x128xf32>
    %201 = arith.mulf %13, %200 : vector<8x128xf32>
    %202 = arith.addf %198, %201 : vector<8x128xf32>
    %c43 = arith.constant 43 : index
    %203 = memref.load %arg1[%c43] : memref<95xf32, #tpu.memory_space<smem>>
    %204 = vector.broadcast %203 : f32 to vector<8x128xf32>
    %205 = arith.mulf %15, %204 : vector<8x128xf32>
    %206 = arith.addf %202, %205 : vector<8x128xf32>
    %c44 = arith.constant 44 : index
    %207 = memref.load %arg1[%c44] : memref<95xf32, #tpu.memory_space<smem>>
    %208 = vector.broadcast %207 : f32 to vector<8x128xf32>
    %209 = arith.addf %206, %208 : vector<8x128xf32>
    %cst_31 = arith.constant 0.000000e+00 : f32
    %210 = vector.broadcast %cst_31 : f32 to vector<8x128xf32>
    %211 = arith.subf %210, %209 : vector<8x128xf32>
    %212 = math.exp %211 : vector<8x128xf32>
    %cst_32 = arith.constant 1.000000e+00 : f32
    %213 = vector.broadcast %cst_32 : f32 to vector<8x128xf32>
    %214 = arith.addf %213, %212 : vector<8x128xf32>
    %215 = tpu.reciprocal %214 : vector<8x128xf32> -> vector<8x128xf32>
    %c45 = arith.constant 45 : index
    %216 = memref.load %arg1[%c45] : memref<95xf32, #tpu.memory_space<smem>>
    %217 = vector.broadcast %216 : f32 to vector<8x128xf32>
    %218 = arith.mulf %1, %217 : vector<8x128xf32>
    %c46 = arith.constant 46 : index
    %219 = memref.load %arg1[%c46] : memref<95xf32, #tpu.memory_space<smem>>
    %220 = vector.broadcast %219 : f32 to vector<8x128xf32>
    %221 = arith.mulf %3, %220 : vector<8x128xf32>
    %222 = arith.addf %218, %221 : vector<8x128xf32>
    %c47 = arith.constant 47 : index
    %223 = memref.load %arg1[%c47] : memref<95xf32, #tpu.memory_space<smem>>
    %224 = vector.broadcast %223 : f32 to vector<8x128xf32>
    %225 = arith.mulf %5, %224 : vector<8x128xf32>
    %226 = arith.addf %222, %225 : vector<8x128xf32>
    %c48 = arith.constant 48 : index
    %227 = memref.load %arg1[%c48] : memref<95xf32, #tpu.memory_space<smem>>
    %228 = vector.broadcast %227 : f32 to vector<8x128xf32>
    %229 = arith.mulf %7, %228 : vector<8x128xf32>
    %230 = arith.addf %226, %229 : vector<8x128xf32>
    %c49 = arith.constant 49 : index
    %231 = memref.load %arg1[%c49] : memref<95xf32, #tpu.memory_space<smem>>
    %232 = vector.broadcast %231 : f32 to vector<8x128xf32>
    %233 = arith.mulf %9, %232 : vector<8x128xf32>
    %234 = arith.addf %230, %233 : vector<8x128xf32>
    %c50 = arith.constant 50 : index
    %235 = memref.load %arg1[%c50] : memref<95xf32, #tpu.memory_space<smem>>
    %236 = vector.broadcast %235 : f32 to vector<8x128xf32>
    %237 = arith.mulf %11, %236 : vector<8x128xf32>
    %238 = arith.addf %234, %237 : vector<8x128xf32>
    %c51 = arith.constant 51 : index
    %239 = memref.load %arg1[%c51] : memref<95xf32, #tpu.memory_space<smem>>
    %240 = vector.broadcast %239 : f32 to vector<8x128xf32>
    %241 = arith.mulf %13, %240 : vector<8x128xf32>
    %242 = arith.addf %238, %241 : vector<8x128xf32>
    %c52 = arith.constant 52 : index
    %243 = memref.load %arg1[%c52] : memref<95xf32, #tpu.memory_space<smem>>
    %244 = vector.broadcast %243 : f32 to vector<8x128xf32>
    %245 = arith.mulf %15, %244 : vector<8x128xf32>
    %246 = arith.addf %242, %245 : vector<8x128xf32>
    %c53 = arith.constant 53 : index
    %247 = memref.load %arg1[%c53] : memref<95xf32, #tpu.memory_space<smem>>
    %248 = vector.broadcast %247 : f32 to vector<8x128xf32>
    %249 = arith.addf %246, %248 : vector<8x128xf32>
    %cst_33 = arith.constant 0.000000e+00 : f32
    %250 = vector.broadcast %cst_33 : f32 to vector<8x128xf32>
    %251 = arith.subf %250, %249 : vector<8x128xf32>
    %252 = math.exp %251 : vector<8x128xf32>
    %cst_34 = arith.constant 1.000000e+00 : f32
    %253 = vector.broadcast %cst_34 : f32 to vector<8x128xf32>
    %254 = arith.addf %253, %252 : vector<8x128xf32>
    %255 = tpu.reciprocal %254 : vector<8x128xf32> -> vector<8x128xf32>
    %c54 = arith.constant 54 : index
    %256 = memref.load %arg1[%c54] : memref<95xf32, #tpu.memory_space<smem>>
    %257 = vector.broadcast %256 : f32 to vector<8x128xf32>
    %258 = arith.mulf %55, %257 : vector<8x128xf32>
    %c55 = arith.constant 55 : index
    %259 = memref.load %arg1[%c55] : memref<95xf32, #tpu.memory_space<smem>>
    %260 = vector.broadcast %259 : f32 to vector<8x128xf32>
    %261 = arith.mulf %95, %260 : vector<8x128xf32>
    %262 = arith.addf %258, %261 : vector<8x128xf32>
    %c56 = arith.constant 56 : index
    %263 = memref.load %arg1[%c56] : memref<95xf32, #tpu.memory_space<smem>>
    %264 = vector.broadcast %263 : f32 to vector<8x128xf32>
    %265 = arith.mulf %135, %264 : vector<8x128xf32>
    %266 = arith.addf %262, %265 : vector<8x128xf32>
    %c57 = arith.constant 57 : index
    %267 = memref.load %arg1[%c57] : memref<95xf32, #tpu.memory_space<smem>>
    %268 = vector.broadcast %267 : f32 to vector<8x128xf32>
    %269 = arith.mulf %175, %268 : vector<8x128xf32>
    %270 = arith.addf %266, %269 : vector<8x128xf32>
    %c58 = arith.constant 58 : index
    %271 = memref.load %arg1[%c58] : memref<95xf32, #tpu.memory_space<smem>>
    %272 = vector.broadcast %271 : f32 to vector<8x128xf32>
    %273 = arith.mulf %215, %272 : vector<8x128xf32>
    %274 = arith.addf %270, %273 : vector<8x128xf32>
    %c59 = arith.constant 59 : index
    %275 = memref.load %arg1[%c59] : memref<95xf32, #tpu.memory_space<smem>>
    %276 = vector.broadcast %275 : f32 to vector<8x128xf32>
    %277 = arith.mulf %255, %276 : vector<8x128xf32>
    %278 = arith.addf %274, %277 : vector<8x128xf32>
    %c60 = arith.constant 60 : index
    %279 = memref.load %arg1[%c60] : memref<95xf32, #tpu.memory_space<smem>>
    %280 = vector.broadcast %279 : f32 to vector<8x128xf32>
    %281 = arith.addf %278, %280 : vector<8x128xf32>
    %cst_35 = arith.constant 0.000000e+00 : f32
    %282 = vector.broadcast %cst_35 : f32 to vector<8x128xf32>
    %283 = arith.subf %282, %281 : vector<8x128xf32>
    %284 = math.exp %283 : vector<8x128xf32>
    %cst_36 = arith.constant 1.000000e+00 : f32
    %285 = vector.broadcast %cst_36 : f32 to vector<8x128xf32>
    %286 = arith.addf %285, %284 : vector<8x128xf32>
    %287 = tpu.reciprocal %286 : vector<8x128xf32> -> vector<8x128xf32>
    %c61 = arith.constant 61 : index
    %288 = memref.load %arg1[%c61] : memref<95xf32, #tpu.memory_space<smem>>
    %289 = vector.broadcast %288 : f32 to vector<8x128xf32>
    %290 = arith.mulf %55, %289 : vector<8x128xf32>
    %c62 = arith.constant 62 : index
    %291 = memref.load %arg1[%c62] : memref<95xf32, #tpu.memory_space<smem>>
    %292 = vector.broadcast %291 : f32 to vector<8x128xf32>
    %293 = arith.mulf %95, %292 : vector<8x128xf32>
    %294 = arith.addf %290, %293 : vector<8x128xf32>
    %c63 = arith.constant 63 : index
    %295 = memref.load %arg1[%c63] : memref<95xf32, #tpu.memory_space<smem>>
    %296 = vector.broadcast %295 : f32 to vector<8x128xf32>
    %297 = arith.mulf %135, %296 : vector<8x128xf32>
    %298 = arith.addf %294, %297 : vector<8x128xf32>
    %c64 = arith.constant 64 : index
    %299 = memref.load %arg1[%c64] : memref<95xf32, #tpu.memory_space<smem>>
    %300 = vector.broadcast %299 : f32 to vector<8x128xf32>
    %301 = arith.mulf %175, %300 : vector<8x128xf32>
    %302 = arith.addf %298, %301 : vector<8x128xf32>
    %c65 = arith.constant 65 : index
    %303 = memref.load %arg1[%c65] : memref<95xf32, #tpu.memory_space<smem>>
    %304 = vector.broadcast %303 : f32 to vector<8x128xf32>
    %305 = arith.mulf %215, %304 : vector<8x128xf32>
    %306 = arith.addf %302, %305 : vector<8x128xf32>
    %c66 = arith.constant 66 : index
    %307 = memref.load %arg1[%c66] : memref<95xf32, #tpu.memory_space<smem>>
    %308 = vector.broadcast %307 : f32 to vector<8x128xf32>
    %309 = arith.mulf %255, %308 : vector<8x128xf32>
    %310 = arith.addf %306, %309 : vector<8x128xf32>
    %c67 = arith.constant 67 : index
    %311 = memref.load %arg1[%c67] : memref<95xf32, #tpu.memory_space<smem>>
    %312 = vector.broadcast %311 : f32 to vector<8x128xf32>
    %313 = arith.addf %310, %312 : vector<8x128xf32>
    %cst_37 = arith.constant 0.000000e+00 : f32
    %314 = vector.broadcast %cst_37 : f32 to vector<8x128xf32>
    %315 = arith.subf %314, %313 : vector<8x128xf32>
    %316 = math.exp %315 : vector<8x128xf32>
    %cst_38 = arith.constant 1.000000e+00 : f32
    %317 = vector.broadcast %cst_38 : f32 to vector<8x128xf32>
    %318 = arith.addf %317, %316 : vector<8x128xf32>
    %319 = tpu.reciprocal %318 : vector<8x128xf32> -> vector<8x128xf32>
    %c68 = arith.constant 68 : index
    %320 = memref.load %arg1[%c68] : memref<95xf32, #tpu.memory_space<smem>>
    %321 = vector.broadcast %320 : f32 to vector<8x128xf32>
    %322 = arith.mulf %55, %321 : vector<8x128xf32>
    %c69 = arith.constant 69 : index
    %323 = memref.load %arg1[%c69] : memref<95xf32, #tpu.memory_space<smem>>
    %324 = vector.broadcast %323 : f32 to vector<8x128xf32>
    %325 = arith.mulf %95, %324 : vector<8x128xf32>
    %326 = arith.addf %322, %325 : vector<8x128xf32>
    %c70 = arith.constant 70 : index
    %327 = memref.load %arg1[%c70] : memref<95xf32, #tpu.memory_space<smem>>
    %328 = vector.broadcast %327 : f32 to vector<8x128xf32>
    %329 = arith.mulf %135, %328 : vector<8x128xf32>
    %330 = arith.addf %326, %329 : vector<8x128xf32>
    %c71 = arith.constant 71 : index
    %331 = memref.load %arg1[%c71] : memref<95xf32, #tpu.memory_space<smem>>
    %332 = vector.broadcast %331 : f32 to vector<8x128xf32>
    %333 = arith.mulf %175, %332 : vector<8x128xf32>
    %334 = arith.addf %330, %333 : vector<8x128xf32>
    %c72 = arith.constant 72 : index
    %335 = memref.load %arg1[%c72] : memref<95xf32, #tpu.memory_space<smem>>
    %336 = vector.broadcast %335 : f32 to vector<8x128xf32>
    %337 = arith.mulf %215, %336 : vector<8x128xf32>
    %338 = arith.addf %334, %337 : vector<8x128xf32>
    %c73 = arith.constant 73 : index
    %339 = memref.load %arg1[%c73] : memref<95xf32, #tpu.memory_space<smem>>
    %340 = vector.broadcast %339 : f32 to vector<8x128xf32>
    %341 = arith.mulf %255, %340 : vector<8x128xf32>
    %342 = arith.addf %338, %341 : vector<8x128xf32>
    %c74 = arith.constant 74 : index
    %343 = memref.load %arg1[%c74] : memref<95xf32, #tpu.memory_space<smem>>
    %344 = vector.broadcast %343 : f32 to vector<8x128xf32>
    %345 = arith.addf %342, %344 : vector<8x128xf32>
    %cst_39 = arith.constant 0.000000e+00 : f32
    %346 = vector.broadcast %cst_39 : f32 to vector<8x128xf32>
    %347 = arith.subf %346, %345 : vector<8x128xf32>
    %348 = math.exp %347 : vector<8x128xf32>
    %cst_40 = arith.constant 1.000000e+00 : f32
    %349 = vector.broadcast %cst_40 : f32 to vector<8x128xf32>
    %350 = arith.addf %349, %348 : vector<8x128xf32>
    %351 = tpu.reciprocal %350 : vector<8x128xf32> -> vector<8x128xf32>
    %c75 = arith.constant 75 : index
    %352 = memref.load %arg1[%c75] : memref<95xf32, #tpu.memory_space<smem>>
    %353 = vector.broadcast %352 : f32 to vector<8x128xf32>
    %354 = arith.mulf %55, %353 : vector<8x128xf32>
    %c76 = arith.constant 76 : index
    %355 = memref.load %arg1[%c76] : memref<95xf32, #tpu.memory_space<smem>>
    %356 = vector.broadcast %355 : f32 to vector<8x128xf32>
    %357 = arith.mulf %95, %356 : vector<8x128xf32>
    %358 = arith.addf %354, %357 : vector<8x128xf32>
    %c77 = arith.constant 77 : index
    %359 = memref.load %arg1[%c77] : memref<95xf32, #tpu.memory_space<smem>>
    %360 = vector.broadcast %359 : f32 to vector<8x128xf32>
    %361 = arith.mulf %135, %360 : vector<8x128xf32>
    %362 = arith.addf %358, %361 : vector<8x128xf32>
    %c78 = arith.constant 78 : index
    %363 = memref.load %arg1[%c78] : memref<95xf32, #tpu.memory_space<smem>>
    %364 = vector.broadcast %363 : f32 to vector<8x128xf32>
    %365 = arith.mulf %175, %364 : vector<8x128xf32>
    %366 = arith.addf %362, %365 : vector<8x128xf32>
    %c79 = arith.constant 79 : index
    %367 = memref.load %arg1[%c79] : memref<95xf32, #tpu.memory_space<smem>>
    %368 = vector.broadcast %367 : f32 to vector<8x128xf32>
    %369 = arith.mulf %215, %368 : vector<8x128xf32>
    %370 = arith.addf %366, %369 : vector<8x128xf32>
    %c80 = arith.constant 80 : index
    %371 = memref.load %arg1[%c80] : memref<95xf32, #tpu.memory_space<smem>>
    %372 = vector.broadcast %371 : f32 to vector<8x128xf32>
    %373 = arith.mulf %255, %372 : vector<8x128xf32>
    %374 = arith.addf %370, %373 : vector<8x128xf32>
    %c81 = arith.constant 81 : index
    %375 = memref.load %arg1[%c81] : memref<95xf32, #tpu.memory_space<smem>>
    %376 = vector.broadcast %375 : f32 to vector<8x128xf32>
    %377 = arith.addf %374, %376 : vector<8x128xf32>
    %cst_41 = arith.constant 0.000000e+00 : f32
    %378 = vector.broadcast %cst_41 : f32 to vector<8x128xf32>
    %379 = arith.subf %378, %377 : vector<8x128xf32>
    %380 = math.exp %379 : vector<8x128xf32>
    %cst_42 = arith.constant 1.000000e+00 : f32
    %381 = vector.broadcast %cst_42 : f32 to vector<8x128xf32>
    %382 = arith.addf %381, %380 : vector<8x128xf32>
    %383 = tpu.reciprocal %382 : vector<8x128xf32> -> vector<8x128xf32>
    %c82 = arith.constant 82 : index
    %384 = memref.load %arg1[%c82] : memref<95xf32, #tpu.memory_space<smem>>
    %385 = vector.broadcast %384 : f32 to vector<8x128xf32>
    %386 = arith.mulf %287, %385 : vector<8x128xf32>
    %c83 = arith.constant 83 : index
    %387 = memref.load %arg1[%c83] : memref<95xf32, #tpu.memory_space<smem>>
    %388 = vector.broadcast %387 : f32 to vector<8x128xf32>
    %389 = arith.mulf %319, %388 : vector<8x128xf32>
    %390 = arith.addf %386, %389 : vector<8x128xf32>
    %c84 = arith.constant 84 : index
    %391 = memref.load %arg1[%c84] : memref<95xf32, #tpu.memory_space<smem>>
    %392 = vector.broadcast %391 : f32 to vector<8x128xf32>
    %393 = arith.mulf %351, %392 : vector<8x128xf32>
    %394 = arith.addf %390, %393 : vector<8x128xf32>
    %c85 = arith.constant 85 : index
    %395 = memref.load %arg1[%c85] : memref<95xf32, #tpu.memory_space<smem>>
    %396 = vector.broadcast %395 : f32 to vector<8x128xf32>
    %397 = arith.mulf %383, %396 : vector<8x128xf32>
    %398 = arith.addf %394, %397 : vector<8x128xf32>
    %c86 = arith.constant 86 : index
    %399 = memref.load %arg1[%c86] : memref<95xf32, #tpu.memory_space<smem>>
    %400 = vector.broadcast %399 : f32 to vector<8x128xf32>
    %401 = arith.addf %398, %400 : vector<8x128xf32>
    %cst_43 = arith.constant 0.000000e+00 : f32
    %402 = vector.broadcast %cst_43 : f32 to vector<8x128xf32>
    %403 = arith.subf %402, %401 : vector<8x128xf32>
    %404 = math.exp %403 : vector<8x128xf32>
    %cst_44 = arith.constant 1.000000e+00 : f32
    %405 = vector.broadcast %cst_44 : f32 to vector<8x128xf32>
    %406 = arith.addf %405, %404 : vector<8x128xf32>
    %407 = tpu.reciprocal %406 : vector<8x128xf32> -> vector<8x128xf32>
    %c87 = arith.constant 87 : index
    %408 = memref.load %arg1[%c87] : memref<95xf32, #tpu.memory_space<smem>>
    %409 = vector.broadcast %408 : f32 to vector<8x128xf32>
    %410 = arith.mulf %287, %409 : vector<8x128xf32>
    %c88 = arith.constant 88 : index
    %411 = memref.load %arg1[%c88] : memref<95xf32, #tpu.memory_space<smem>>
    %412 = vector.broadcast %411 : f32 to vector<8x128xf32>
    %413 = arith.mulf %319, %412 : vector<8x128xf32>
    %414 = arith.addf %410, %413 : vector<8x128xf32>
    %c89 = arith.constant 89 : index
    %415 = memref.load %arg1[%c89] : memref<95xf32, #tpu.memory_space<smem>>
    %416 = vector.broadcast %415 : f32 to vector<8x128xf32>
    %417 = arith.mulf %351, %416 : vector<8x128xf32>
    %418 = arith.addf %414, %417 : vector<8x128xf32>
    %c90 = arith.constant 90 : index
    %419 = memref.load %arg1[%c90] : memref<95xf32, #tpu.memory_space<smem>>
    %420 = vector.broadcast %419 : f32 to vector<8x128xf32>
    %421 = arith.mulf %383, %420 : vector<8x128xf32>
    %422 = arith.addf %418, %421 : vector<8x128xf32>
    %c91 = arith.constant 91 : index
    %423 = memref.load %arg1[%c91] : memref<95xf32, #tpu.memory_space<smem>>
    %424 = vector.broadcast %423 : f32 to vector<8x128xf32>
    %425 = arith.addf %422, %424 : vector<8x128xf32>
    %cst_45 = arith.constant 0.000000e+00 : f32
    %426 = vector.broadcast %cst_45 : f32 to vector<8x128xf32>
    %427 = arith.subf %426, %425 : vector<8x128xf32>
    %428 = math.exp %427 : vector<8x128xf32>
    %cst_46 = arith.constant 1.000000e+00 : f32
    %429 = vector.broadcast %cst_46 : f32 to vector<8x128xf32>
    %430 = arith.addf %429, %428 : vector<8x128xf32>
    %431 = tpu.reciprocal %430 : vector<8x128xf32> -> vector<8x128xf32>
    %c92 = arith.constant 92 : index
    %432 = memref.load %arg1[%c92] : memref<95xf32, #tpu.memory_space<smem>>
    %433 = vector.broadcast %432 : f32 to vector<8x128xf32>
    %434 = arith.mulf %407, %433 : vector<8x128xf32>
    %c93 = arith.constant 93 : index
    %435 = memref.load %arg1[%c93] : memref<95xf32, #tpu.memory_space<smem>>
    %436 = vector.broadcast %435 : f32 to vector<8x128xf32>
    %437 = arith.mulf %431, %436 : vector<8x128xf32>
    %438 = arith.addf %434, %437 : vector<8x128xf32>
    %c94 = arith.constant 94 : index
    %439 = memref.load %arg1[%c94] : memref<95xf32, #tpu.memory_space<smem>>
    %440 = vector.broadcast %439 : f32 to vector<8x128xf32>
    %441 = arith.addf %438, %440 : vector<8x128xf32>
    %cst_47 = arith.constant 0.000000e+00 : f32
    %442 = vector.broadcast %cst_47 : f32 to vector<8x128xf32>
    %443 = arith.subf %442, %441 : vector<8x128xf32>
    %444 = math.exp %443 : vector<8x128xf32>
    %cst_48 = arith.constant 1.000000e+00 : f32
    %445 = vector.broadcast %cst_48 : f32 to vector<8x128xf32>
    %446 = arith.addf %445, %444 : vector<8x128xf32>
    %447 = tpu.reciprocal %446 : vector<8x128xf32> -> vector<8x128xf32>
    %c0_49 = arith.constant 0 : index
    %c0_50 = arith.constant 0 : index
    %448 = vector.load %arg3[%c0_49, %c0_50] : memref<8x128xf32, #tpu.memory_space<vmem>>, vector<8x128xf32>
    tpu.vector_store %arg3[%c0_49, %c0_50], %447 {strides = array<i32>} : memref<8x128xf32, #tpu.memory_space<vmem>>, vector<8x128xf32>,
    return
  }
  func.func @transform_0(%arg0: i32) -> i32 {
    %c0_i32 = arith.constant 0 : i32
    %c0_i32_0 = arith.constant 0 : i32
    return %c0_i32 : i32
  }
  func.func @transform_1(%arg0: i32) -> (i32, i32, i32) {
    %c0_i32 = arith.constant 0 : i32
    %c0_i32_0 = arith.constant 0 : i32
    %c0_i32_1 = arith.constant 0 : i32
    return %c0_i32, %arg0, %c0_i32_0 : i32, i32, i32
  }
  func.func @transform_2(%arg0: i32) -> (i32, i32) {
    %c0_i32 = arith.constant 0 : i32
    %c0_i32_0 = arith.constant 0 : i32
    return %arg0, %c0_i32 : i32, i32
  }
}

</mosaic_0001>

<llo_original>
// kernel: tpu_custom_call.1
$region0: #{tpu_custom_call.1}
  #allocation0 [shape = 'u32[]', space=smem, size = 0x4, offset = 0x4, fixed_abs, tag = 'smem constant byte address 0x4 - core index']
  #allocation1 [shape = 'u32[144,128]{1,0:T(1,128)}', space=vmem, size = 0x12000, scoped, tag = 'internal scratch']
  %s0 = inlined_call_operand.hbm [shape: f32[95], index: 0, kind: input, shape index: {}]
  %s1 = inlined_call_operand.hbm [shape: f32[8,8,128], index: 1, kind: input, shape index: {}]
  %s2 = inlined_call_operand.hbm [shape: f32[8,128], index: 2, kind: output, shape index: {}]
  %s3 = sld [smem:[#allocation0]]
  $region26: #{tpu_custom_call.1} parent=0
    _
  %s5 = ssub.s32 1, %s3
  %s6 = scalar_select 0, %s5, %s3
  $region1: #{tpu_custom_call.1} parent=0
    #allocation2 [shape = 'u8[512]{0}', space=smem, size = 0x200, scoped, tag = 'input window, operand 0, single buffered']
    #allocation3 [shape = 's32[1]{0}', space=sflag, size = 0x4, scoped, tag = 'scoped memory for tpu_custom_call.1']
    #allocation4 [shape = 's32[1]{0}', space=sflag, size = 0x4, scoped, tag = 'scoped memory for tpu_custom_call.1']
    #allocation5 [shape = 's32[1]{0}', space=sflag, size = 0x4, scoped, tag = 'scoped memory for tpu_custom_call.1']
    #allocation6 [shape = 'u8[32768]{0}', space=vmem, size = 0x8000, scoped, tag = 'input window, operand 1, single buffered']
    #allocation7 [shape = 'u8[4096]{0}', space=vmem, size = 0x1000, scoped, tag = 'output window, operand 0, single buffered']
    %7 = vsyncpa [#allocation5], 0
    %8 = vsyncpa [#allocation3], 0
    %9 = vsyncpa [#allocation4], 0
    // Predicated region
    $region2: #{tpu_custom_call.1} parent=1 // pred_check
      _
    $region3: #{tpu_custom_call.1} parent=1 // pred_check_branch
      %11 = sbr.rel (0) target = $region5
    $region4: #{tpu_custom_call.1} parent=1 // pred_region
      %s13 = ssub.s32 16, 16
      %14 = vsyncadd [#allocation5], %s13
      %17 = dma.hbm_to_smem %s0, 16, [#allocation2], [#allocation5]
    $region5: #{tpu_custom_call.1} parent=1 // pred_fallthru
      _
    // Predicated region
    $region6: #{tpu_custom_call.1} parent=1 // pred_check
      _
    $region7: #{tpu_custom_call.1} parent=1 // pred_check_branch
      %19 = sbr.rel (0) target = $region9
    $region8: #{tpu_custom_call.1} parent=1 // pred_region
      %s21 = ssub.s32 1024, 1024
      %22 = vsyncadd [#allocation3], %s21
      %s23 = sshll.u32 [#allocation6], 4
      %s24 = int_to_ptr.vmem [resolvable:$true] %s23
      %29 = dma.hbm_to_vmem [thread:$0]  %s1, 1024, %s24, [#allocation3], 128, 128, 8
    $region9: #{tpu_custom_call.1} parent=1 // pred_fallthru
      _
    // Predicated region
    $region10: #{tpu_custom_call.1} parent=1 // pred_check
      _
    $region11: #{tpu_custom_call.1} parent=1 // pred_check_branch
      %31 = sbr.rel (0) target = $region13
    $region12: #{tpu_custom_call.1} parent=1 // pred_region
      %32 = dma.done [#allocation5], 16
    $region13: #{tpu_custom_call.1} parent=1 // pred_fallthru
      _
    // Predicated region
    $region14: #{tpu_custom_call.1} parent=1 // pred_check
      _
    $region15: #{tpu_custom_call.1} parent=1 // pred_check_branch
      %34 = sbr.rel (0) target = $region17
    $region16: #{tpu_custom_call.1} parent=1 // pred_region
      %35 = dma.done [#allocation3], 1024
    $region17: #{tpu_custom_call.1} parent=1 // pred_fallthru
      _
    %36 = sfence
    %v37 = vld [vmem:[#allocation6] sm:$0xff]
    %s38 = scalar_lea.vmem [#allocation6], 8
    %v39 = vld [vmem:[%s38] sm:$0xff]
    %s40 = scalar_lea.vmem [#allocation6], 16
    %v41 = vld [vmem:[%s40] sm:$0xff]
    %s42 = scalar_lea.vmem [#allocation6], 24
    %v43 = vld [vmem:[%s42] sm:$0xff]
    %s44 = scalar_lea.vmem [#allocation6], 32
    %v45 = vld [vmem:[%s44] sm:$0xff]
    %s46 = scalar_lea.vmem [#allocation6], 40
    %v47 = vld [vmem:[%s46] sm:$0xff]
    %s48 = scalar_lea.vmem [#allocation6], 48
    %v49 = vld [vmem:[%s48] sm:$0xff]
    %s50 = scalar_lea.vmem [#allocation6], 56
    %v51 = vld [vmem:[%s50] sm:$0xff]
    %s52 = sld [smem:[#allocation2]]
    %v53 = vstv %s52
    %v54 = vmul.f32 %v37, %v53
    %s55 = sld [smem:[#allocation2 + $0x1]]
    %v56 = vstv %s55
    %v57 = vmul.f32 %v39, %v56
    %v58 = vadd.f32 %v54, %v57
    %s59 = sld [smem:[#allocation2 + $0x2]]
    %v60 = vstv %s59
    %v61 = vmul.f32 %v41, %v60
    %v62 = vadd.f32 %v58, %v61
    %s63 = sld [smem:[#allocation2 + $0x3]]
    %v64 = vstv %s63
    %v65 = vmul.f32 %v43, %v64
    %v66 = vadd.f32 %v62, %v65
    %s67 = sld [smem:[#allocation2 + $0x4]]
    %v68 = vstv %s67
    %v69 = vmul.f32 %v45, %v68
    %v70 = vadd.f32 %v66, %v69
    %s71 = sld [smem:[#allocation2 + $0x5]]
    %v72 = vstv %s71
    %v73 = vmul.f32 %v47, %v72
    %v74 = vadd.f32 %v70, %v73
    %s75 = sld [smem:[#allocation2 + $0x6]]
    %v76 = vstv %s75
    %v77 = vmul.f32 %v49, %v76
    %v78 = vadd.f32 %v74, %v77
    %s79 = sld [smem:[#allocation2 + $0x7]]
    %v80 = vstv %s79
    %v81 = vmul.f32 %v51, %v80
    %v82 = vadd.f32 %v78, %v81
    %s83 = sld [smem:[#allocation2 + $0x8]]
    %v84 = vstv %s83
    %v85 = vadd.f32 %v82, %v84
    %v86 = vsub.f32 0.0, %v85
    %v87 = vmul.f32 %v86, 1.442695
    %v88 = vpow.pop %v87
    %v89 = vadd.f32 %v88, 1.0
    %v90 = vrcp.pop %v89
    %s91 = sld [smem:[#allocation2 + $0x9]]
    %v92 = vstv %s91
    %v93 = vmul.f32 %v37, %v92
    %s94 = sld [smem:[#allocation2 + $0xa]]
    %v95 = vstv %s94
    %v96 = vmul.f32 %v39, %v95
    %v97 = vadd.f32 %v93, %v96
    %s98 = sld [smem:[#allocation2 + $0xb]]
    %v99 = vstv %s98
    %v100 = vmul.f32 %v41, %v99
    %v101 = vadd.f32 %v97, %v100
    %s102 = sld [smem:[#allocation2 + $0xc]]
    %v103 = vstv %s102
    %v104 = vmul.f32 %v43, %v103
    %v105 = vadd.f32 %v101, %v104
    %s106 = sld [smem:[#allocation2 + $0xd]]
    %v107 = vstv %s106
    %v108 = vmul.f32 %v45, %v107
    %v109 = vadd.f32 %v105, %v108
    %s110 = sld [smem:[#allocation2 + $0xe]]
    %v111 = vstv %s110
    %v112 = vmul.f32 %v47, %v111
    %v113 = vadd.f32 %v109, %v112
    %s114 = sld [smem:[#allocation2 + $0xf]]
    %v115 = vstv %s114
    %v116 = vmul.f32 %v49, %v115
    %v117 = vadd.f32 %v113, %v116
    %s118 = sld [smem:[#allocation2 + $0x10]]
    %v119 = vstv %s118
    %v120 = vmul.f32 %v51, %v119
    %v121 = vadd.f32 %v117, %v120
    %s122 = sld [smem:[#allocation2 + $0x11]]
    %v123 = vstv %s122
    %v124 = vadd.f32 %v121, %v123
    %v125 = vsub.f32 0.0, %v124
    %v126 = vmul.f32 %v125, 1.442695
    %v127 = vpow.pop %v126
    %v128 = vadd.f32 %v127, 1.0
    %v129 = vrcp.pop %v128
    %s130 = sld [smem:[#allocation2 + $0x12]]
    %v131 = vstv %s130
    %v132 = vmul.f32 %v37, %v131
    %s133 = sld [smem:[#allocation2 + $0x13]]
    %v134 = vstv %s133
    %v135 = vmul.f32 %v39, %v134
    %v136 = vadd.f32 %v132, %v135
    %s137 = sld [smem:[#allocation2 + $0x14]]
    %v138 = vstv %s137
    %v139 = vmul.f32 %v41, %v138
    %v140 = vadd.f32 %v136, %v139
    %s141 = sld [smem:[#allocation2 + $0x15]]
    %v142 = vstv %s141
    %v143 = vmul.f32 %v43, %v142
    %v144 = vadd.f32 %v140, %v143
    %s145 = sld [smem:[#allocation2 + $0x16]]
    %v146 = vstv %s145
    %v147 = vmul.f32 %v45, %v146
    %v148 = vadd.f32 %v144, %v147
    %s149 = sld [smem:[#allocation2 + $0x17]]
    %v150 = vstv %s149
    %v151 = vmul.f32 %v47, %v150
    %v152 = vadd.f32 %v148, %v151
    %s153 = sld [smem:[#allocation2 + $0x18]]
    %v154 = vstv %s153
    %v155 = vmul.f32 %v49, %v154
    %v156 = vadd.f32 %v152, %v155
    %s157 = sld [smem:[#allocation2 + $0x19]]
    %v158 = vstv %s157
    %v159 = vmul.f32 %v51, %v158
    %v160 = vadd.f32 %v156, %v159
    %s161 = sld [smem:[#allocation2 + $0x1a]]
    %v162 = vstv %s161
    %v163 = vadd.f32 %v160, %v162
    %v164 = vsub.f32 0.0, %v163
    %v165 = vmul.f32 %v164, 1.442695
    %v166 = vpow.pop %v165
    %v167 = vadd.f32 %v166, 1.0
    %v168 = vrcp.pop %v167
    %s169 = sld [smem:[#allocation2 + $0x1b]]
    %v170 = vstv %s169
    %v171 = vmul.f32 %v37, %v170
    %s172 = sld [smem:[#allocation2 + $0x1c]]
    %v173 = vstv %s172
    %v174 = vmul.f32 %v39, %v173
    %v175 = vadd.f32 %v171, %v174
    %s176 = sld [smem:[#allocation2 + $0x1d]]
    %v177 = vstv %s176
    %v178 = vmul.f32 %v41, %v177
    %v179 = vadd.f32 %v175, %v178
    %s180 = sld [smem:[#allocation2 + $0x1e]]
    %v181 = vstv %s180
    %v182 = vmul.f32 %v43, %v181
    %v183 = vadd.f32 %v179, %v182
    %s184 = sld [smem:[#allocation2 + $0x1f]]
    %v185 = vstv %s184
    %v186 = vmul.f32 %v45, %v185
    %v187 = vadd.f32 %v183, %v186
    %s188 = sld [smem:[#allocation2 + $0x20]]
    %v189 = vstv %s188
    %v190 = vmul.f32 %v47, %v189
    %v191 = vadd.f32 %v187, %v190
    %s192 = sld [smem:[#allocation2 + $0x21]]
    %v193 = vstv %s192
    %v194 = vmul.f32 %v49, %v193
    %v195 = vadd.f32 %v191, %v194
    %s196 = sld [smem:[#allocation2 + $0x22]]
    %v197 = vstv %s196
    %v198 = vmul.f32 %v51, %v197
    %v199 = vadd.f32 %v195, %v198
    %s200 = sld [smem:[#allocation2 + $0x23]]
    %v201 = vstv %s200
    %v202 = vadd.f32 %v199, %v201
    %v203 = vsub.f32 0.0, %v202
    %v204 = vmul.f32 %v203, 1.442695
    %v205 = vpow.pop %v204
    %v206 = vadd.f32 %v205, 1.0
    %v207 = vrcp.pop %v206
    %s208 = sld [smem:[#allocation2 + $0x24]]
    %v209 = vstv %s208
    %v210 = vmul.f32 %v37, %v209
    %s211 = sld [smem:[#allocation2 + $0x25]]
    %v212 = vstv %s211
    %v213 = vmul.f32 %v39, %v212
    %v214 = vadd.f32 %v210, %v213
    %s215 = sld [smem:[#allocation2 + $0x26]]
    %v216 = vstv %s215
    %v217 = vmul.f32 %v41, %v216
    %v218 = vadd.f32 %v214, %v217
    %s219 = sld [smem:[#allocation2 + $0x27]]
    %v220 = vstv %s219
    %v221 = vmul.f32 %v43, %v220
    %v222 = vadd.f32 %v218, %v221
    %s223 = sld [smem:[#allocation2 + $0x28]]
    %v224 = vstv %s223
    %v225 = vmul.f32 %v45, %v224
    %v226 = vadd.f32 %v222, %v225
    %s227 = sld [smem:[#allocation2 + $0x29]]
    %v228 = vstv %s227
    %v229 = vmul.f32 %v47, %v228
    %v230 = vadd.f32 %v226, %v229
    %s231 = sld [smem:[#allocation2 + $0x2a]]
    %v232 = vstv %s231
    %v233 = vmul.f32 %v49, %v232
    %v234 = vadd.f32 %v230, %v233
    %s235 = sld [smem:[#allocation2 + $0x2b]]
    %v236 = vstv %s235
    %v237 = vmul.f32 %v51, %v236
    %v238 = vadd.f32 %v234, %v237
    %s239 = sld [smem:[#allocation2 + $0x2c]]
    %v240 = vstv %s239
    %v241 = vadd.f32 %v238, %v240
    %v242 = vsub.f32 0.0, %v241
    %v243 = vmul.f32 %v242, 1.442695
    %v244 = vpow.pop %v243
    %v245 = vadd.f32 %v244, 1.0
    %v246 = vrcp.pop %v245
    %s247 = sld [smem:[#allocation2 + $0x2d]]
    %v248 = vstv %s247
    %v249 = vmul.f32 %v37, %v248
    %s250 = sld [smem:[#allocation2 + $0x2e]]
    %v251 = vstv %s250
    %v252 = vmul.f32 %v39, %v251
    %v253 = vadd.f32 %v249, %v252
    %s254 = sld [smem:[#allocation2 + $0x2f]]
    %v255 = vstv %s254
    %v256 = vmul.f32 %v41, %v255
    %v257 = vadd.f32 %v253, %v256
    %s258 = sld [smem:[#allocation2 + $0x30]]
    %v259 = vstv %s258
    %v260 = vmul.f32 %v43, %v259
    %v261 = vadd.f32 %v257, %v260
    %s262 = sld [smem:[#allocation2 + $0x31]]
    %v263 = vstv %s262
    %v264 = vmul.f32 %v45, %v263
    %v265 = vadd.f32 %v261, %v264
    %s266 = sld [smem:[#allocation2 + $0x32]]
    %v267 = vstv %s266
    %v268 = vmul.f32 %v47, %v267
    %v269 = vadd.f32 %v265, %v268
    %s270 = sld [smem:[#allocation2 + $0x33]]
    %v271 = vstv %s270
    %v272 = vmul.f32 %v49, %v271
    %v273 = vadd.f32 %v269, %v272
    %s274 = sld [smem:[#allocation2 + $0x34]]
    %v275 = vstv %s274
    %v276 = vmul.f32 %v51, %v275
    %v277 = vadd.f32 %v273, %v276
    %s278 = sld [smem:[#allocation2 + $0x35]]
    %v279 = vstv %s278
    %v280 = vadd.f32 %v277, %v279
    %v281 = vsub.f32 0.0, %v280
    %v282 = vmul.f32 %v281, 1.442695
    %v283 = vpow.pop %v282
    %v284 = vadd.f32 %v283, 1.0
    %v285 = vrcp.pop %v284
    %s286 = sld [smem:[#allocation2 + $0x36]]
    %v287 = vstv %s286
    %v288 = vmul.f32 %v90, %v287
    %s289 = sld [smem:[#allocation2 + $0x37]]
    %v290 = vstv %s289
    %v291 = vmul.f32 %v129, %v290
    %v292 = vadd.f32 %v288, %v291
    %s293 = sld [smem:[#allocation2 + $0x38]]
    %v294 = vstv %s293
    %v295 = vmul.f32 %v168, %v294
    %v296 = vadd.f32 %v292, %v295
    %s297 = sld [smem:[#allocation2 + $0x39]]
    %v298 = vstv %s297
    %v299 = vmul.f32 %v207, %v298
    %v300 = vadd.f32 %v296, %v299
    %s301 = sld [smem:[#allocation2 + $0x3a]]
    %v302 = vstv %s301
    %v303 = vmul.f32 %v246, %v302
    %v304 = vadd.f32 %v300, %v303
    %s305 = sld [smem:[#allocation2 + $0x3b]]
    %v306 = vstv %s305
    %v307 = vmul.f32 %v285, %v306
    %v308 = vadd.f32 %v304, %v307
    %s309 = sld [smem:[#allocation2 + $0x3c]]
    %v310 = vstv %s309
    %v311 = vadd.f32 %v308, %v310
    %v312 = vsub.f32 0.0, %v311
    %v313 = vmul.f32 %v312, 1.442695
    %v314 = vpow.pop %v313
    %v315 = vadd.f32 %v314, 1.0
    %v316 = vrcp.pop %v315
    %s317 = sld [smem:[#allocation2 + $0x3d]]
    %v318 = vstv %s317
    %v319 = vmul.f32 %v90, %v318
    %s320 = sld [smem:[#allocation2 + $0x3e]]
    %v321 = vstv %s320
    %v322 = vmul.f32 %v129, %v321
    %v323 = vadd.f32 %v319, %v322
    %s324 = sld [smem:[#allocation2 + $0x3f]]
    %v325 = vstv %s324
    %v326 = vmul.f32 %v168, %v325
    %v327 = vadd.f32 %v323, %v326
    %s328 = sld [smem:[#allocation2 + $0x40]]
    %v329 = vstv %s328
    %v330 = vmul.f32 %v207, %v329
    %v331 = vadd.f32 %v327, %v330
    %s332 = sld [smem:[#allocation2 + $0x41]]
    %v333 = vstv %s332
    %v334 = vmul.f32 %v246, %v333
    %v335 = vadd.f32 %v331, %v334
    %s336 = sld [smem:[#allocation2 + $0x42]]
    %v337 = vstv %s336
    %v338 = vmul.f32 %v285, %v337
    %v339 = vadd.f32 %v335, %v338
    %s340 = sld [smem:[#allocation2 + $0x43]]
    %v341 = vstv %s340
    %v342 = vadd.f32 %v339, %v341
    %v343 = vsub.f32 0.0, %v342
    %v344 = vmul.f32 %v343, 1.442695
    %v345 = vpow.pop %v344
    %v346 = vadd.f32 %v345, 1.0
    %v347 = vrcp.pop %v346
    %s348 = sld [smem:[#allocation2 + $0x44]]
    %v349 = vstv %s348
    %v350 = vmul.f32 %v90, %v349
    %s351 = sld [smem:[#allocation2 + $0x45]]
    %v352 = vstv %s351
    %v353 = vmul.f32 %v129, %v352
    %v354 = vadd.f32 %v350, %v353
    %s355 = sld [smem:[#allocation2 + $0x46]]
    %v356 = vstv %s355
    %v357 = vmul.f32 %v168, %v356
    %v358 = vadd.f32 %v354, %v357
    %s359 = sld [smem:[#allocation2 + $0x47]]
    %v360 = vstv %s359
    %v361 = vmul.f32 %v207, %v360
    %v362 = vadd.f32 %v358, %v361
    %s363 = sld [smem:[#allocation2 + $0x48]]
    %v364 = vstv %s363
    %v365 = vmul.f32 %v246, %v364
    %v366 = vadd.f32 %v362, %v365
    %s367 = sld [smem:[#allocation2 + $0x49]]
    %v368 = vstv %s367
    %v369 = vmul.f32 %v285, %v368
    %v370 = vadd.f32 %v366, %v369
    %s371 = sld [smem:[#allocation2 + $0x4a]]
    %v372 = vstv %s371
    %v373 = vadd.f32 %v370, %v372
    %v374 = vsub.f32 0.0, %v373
    %v375 = vmul.f32 %v374, 1.442695
    %v376 = vpow.pop %v375
    %v377 = vadd.f32 %v376, 1.0
    %v378 = vrcp.pop %v377
    %s379 = sld [smem:[#allocation2 + $0x4b]]
    %v380 = vstv %s379
    %v381 = vmul.f32 %v90, %v380
    %s382 = sld [smem:[#allocation2 + $0x4c]]
    %v383 = vstv %s382
    %v384 = vmul.f32 %v129, %v383
    %v385 = vadd.f32 %v381, %v384
    %s386 = sld [smem:[#allocation2 + $0x4d]]
    %v387 = vstv %s386
    %v388 = vmul.f32 %v168, %v387
    %v389 = vadd.f32 %v385, %v388
    %s390 = sld [smem:[#allocation2 + $0x4e]]
    %v391 = vstv %s390
    %v392 = vmul.f32 %v207, %v391
    %v393 = vadd.f32 %v389, %v392
    %s394 = sld [smem:[#allocation2 + $0x4f]]
    %v395 = vstv %s394
    %v396 = vmul.f32 %v246, %v395
    %v397 = vadd.f32 %v393, %v396
    %s398 = sld [smem:[#allocation2 + $0x50]]
    %v399 = vstv %s398
    %v400 = vmul.f32 %v285, %v399
    %v401 = vadd.f32 %v397, %v400
    %s402 = sld [smem:[#allocation2 + $0x51]]
    %v403 = vstv %s402
    %v404 = vadd.f32 %v401, %v403
    %v405 = vsub.f32 0.0, %v404
    %v406 = vmul.f32 %v405, 1.442695
    %v407 = vpow.pop %v406
    %v408 = vadd.f32 %v407, 1.0
    %v409 = vrcp.pop %v408
    %s410 = sld [smem:[#allocation2 + $0x52]]
    %v411 = vstv %s410
    %v412 = vmul.f32 %v316, %v411
    %s413 = sld [smem:[#allocation2 + $0x53]]
    %v414 = vstv %s413
    %v415 = vmul.f32 %v347, %v414
    %v416 = vadd.f32 %v412, %v415
    %s417 = sld [smem:[#allocation2 + $0x54]]
    %v418 = vstv %s417
    %v419 = vmul.f32 %v378, %v418
    %v420 = vadd.f32 %v416, %v419
    %s421 = sld [smem:[#allocation2 + $0x55]]
    %v422 = vstv %s421
    %v423 = vmul.f32 %v409, %v422
    %v424 = vadd.f32 %v420, %v423
    %s425 = sld [smem:[#allocation2 + $0x56]]
    %v426 = vstv %s425
    %v427 = vadd.f32 %v424, %v426
    %v428 = vsub.f32 0.0, %v427
    %v429 = vmul.f32 %v428, 1.442695
    %v430 = vpow.pop %v429
    %v431 = vadd.f32 %v430, 1.0
    %v432 = vrcp.pop %v431
    %s433 = sld [smem:[#allocation2 + $0x57]]
    %v434 = vstv %s433
    %v435 = vmul.f32 %v316, %v434
    %s436 = sld [smem:[#allocation2 + $0x58]]
    %v437 = vstv %s436
    %v438 = vmul.f32 %v347, %v437
    %v439 = vadd.f32 %v435, %v438
    %s440 = sld [smem:[#allocation2 + $0x59]]
    %v441 = vstv %s440
    %v442 = vmul.f32 %v378, %v441
    %v443 = vadd.f32 %v439, %v442
    %s444 = sld [smem:[#allocation2 + $0x5a]]
    %v445 = vstv %s444
    %v446 = vmul.f32 %v409, %v445
    %v447 = vadd.f32 %v443, %v446
    %s448 = sld [smem:[#allocation2 + $0x5b]]
    %v449 = vstv %s448
    %v450 = vadd.f32 %v447, %v449
    %v451 = vsub.f32 0.0, %v450
    %v452 = vmul.f32 %v451, 1.442695
    %v453 = vpow.pop %v452
    %v454 = vadd.f32 %v453, 1.0
    %v455 = vrcp.pop %v454
    %s456 = sld [smem:[#allocation2 + $0x5c]]
    %v457 = vstv %s456
    %v458 = vmul.f32 %v432, %v457
    %s459 = sld [smem:[#allocation2 + $0x5d]]
    %v460 = vstv %s459
    %v461 = vmul.f32 %v455, %v460
    %v462 = vadd.f32 %v458, %v461
    %s463 = sld [smem:[#allocation2 + $0x5e]]
    %v464 = vstv %s463
    %v465 = vadd.f32 %v462, %v464
    %v466 = vsub.f32 0.0, %v465
    %v467 = vmul.f32 %v466, 1.442695
    %v468 = vpow.pop %v467
    %v469 = vadd.f32 %v468, 1.0
    %v470 = vrcp.pop %v469
    %471 = vst [vmem:[#allocation7] sm:$0xff] %v470
    // Predicated region
    $region18: #{tpu_custom_call.1} parent=1 // pred_check
      _
    $region19: #{tpu_custom_call.1} parent=1 // pred_check_branch
      %473 = sbr.rel (0) target = $region21
    $region20: #{tpu_custom_call.1} parent=1 // pred_region
      %s475 = ssub.s32 128, 128
      %476 = vsyncadd [#allocation4], %s475
      %s478 = sshll.u32 [#allocation7], 4
      %s479 = int_to_ptr.vmem [resolvable:$true] %s478
      %481 = dma.vmem_to_hbm [thread:$0]  %s479, 128, %s2, [#allocation4]
    $region21: #{tpu_custom_call.1} parent=1 // pred_fallthru
      _
    // Predicated region
    $region22: #{tpu_custom_call.1} parent=1 // pred_check
      _
    $region23: #{tpu_custom_call.1} parent=1 // pred_check_branch
      %483 = sbr.rel (0) target = $region25
    $region24: #{tpu_custom_call.1} parent=1 // pred_region
      %484 = dma.done [#allocation4], 128
    $region25: #{tpu_custom_call.1} parent=1 // pred_fallthru
      _
    %485 = vsyncpa [#allocation3], 1
    %486 = vsyncpa [#allocation4], 1
    %487 = vsyncpa [#allocation5], 1

</llo_original>
